<compile_context>
chip_gen: v6e
topology: v6e:2x2x1
jax: 0.10.0
libtpu: 0.0.40
codegen_flags: <defaults>
</compile_context>

<pallas_src>
import jax
import jax.numpy as jnp
from jax.experimental import pallas as pl
from jax.experimental.pallas import tpu as pltpu

INPUT_DIM = 74
HIDDEN_DIM = 128


def _round_up(n, m):
    return ((n + m - 1) // m) * m


def _hw_config():
    """(max batch-tile rows, vmem_limit_bytes) chosen per TPU generation."""
    try:
        info = pltpu.get_tpu_info()
        vmem = getattr(info, "vmem_capacity_bytes", None)
        if vmem is not None:
            if vmem <= 80 * 1024 * 1024:        # v7x-class: 64 MiB VMEM per TC
                return 4096, 32 * 1024 * 1024   # live footprint ~15 MB
            return 8192, 64 * 1024 * 1024       # v5e/v6e: 128 MiB VMEM
    except Exception:
        pass
    return 2048, 32 * 1024 * 1024               # safe fallback


def _select_tile(b, tb_max):
    """Batch tile: multiple of 8, <= tb_max, >=2 tiles once B is big enough
    so both v7x TensorCores get work (harmless on single-TC chips)."""
    b8 = _round_up(max(int(b), 1), 8)
    tb = min(tb_max, b8)
    if b8 >= 1024:
        tb = min(tb, _round_up(pl.cdiv(b8, 2), 8))
    return tb


def _audio_encoder_kernel(x_ref, w1_ref, b1_ref, w2_ref, b2_ref, o_ref):
    # x_ref: (TB, D_in) f32    w1_ref: (D_in, 2H) bf16   b1_ref: (1, 2H) f32
    # w2_ref: (2H, H)  bf16    b2_ref: (1, H)    f32     o_ref:  (TB, H) f32
    x = x_ref[...].astype(jnp.bfloat16)

    # Layer 1: Linear + bias + ReLU (bf16 MXU matmul, f32 accumulation).
    h = jnp.dot(x, w1_ref[...], preferred_element_type=jnp.float32)
    h = jnp.maximum(h + b1_ref[...], 0.0)

    # Dropout(p=0.2) is identity in eval mode.
    # TODO(synk): training-mode dropout (pltpu.prng_seed / prng_random_bits masking).

    # Layer 2: Linear + bias.
    out = jnp.dot(h.astype(jnp.bfloat16), w2_ref[...],
                  preferred_element_type=jnp.float32)
    o_ref[...] = (out + b2_ref[...]).astype(o_ref.dtype)


def audio_encoder_forward(x, params):
    """x: (B, 1, D_in) float32, params from prepare_params -> (B, H) float32."""
    w1, b1, w2, b2 = params
    d_in, d_hid = w1.shape
    d_out = w2.shape[1]

    x2d = jnp.squeeze(x, axis=1)                 # (B,1,D) -> (B,D): free bitcast
    B = x2d.shape[0]

    tb_max, vmem_limit = _hw_config()
    tb = _select_tile(B, tb_max)
    num_tiles = pl.cdiv(B, tb)                   # partial last block masked by Pallas

    flops = 2 * B * (d_in * d_hid + d_hid * d_out)
    bytes_accessed = (B * d_in * 4 + B * d_out * 4
                      + w1.size * 2 + w2.size * 2 + (b1.size + b2.size) * 4)

    return pl.pallas_call(
        _audio_encoder_kernel,
        out_shape=jax.ShapeDtypeStruct((B, d_out), jnp.float32),
        grid_spec=pltpu.PrefetchScalarGridSpec(
            num_scalar_prefetch=0,
            grid=(num_tiles,),
            in_specs=[
                pl.BlockSpec((tb, d_in), lambda i: (i, 0)),      # batch-tiled x
                pl.BlockSpec((d_in, d_hid), lambda i: (0, 0)),   # VMEM-resident w1
                pl.BlockSpec((1, d_hid), lambda i: (0, 0)),      # b1
                pl.BlockSpec((d_hid, d_out), lambda i: (0, 0)),  # VMEM-resident w2
                pl.BlockSpec((1, d_out), lambda i: (0, 0)),      # b2
            ],
            out_specs=pl.BlockSpec((tb, d_out), lambda i: (i, 0)),
        ),
        compiler_params=pltpu.CompilerParams(
            dimension_semantics=("parallel",),
            vmem_limit_bytes=vmem_limit,
        ),
        cost_estimate=pl.CostEstimate(
            flops=flops, transcendentals=0, bytes_accessed=bytes_accessed),
    )(x2d, w1, b1, w2, b2)


def init_params(key, input_dim=INPUT_DIM, hidden_dim=HIDDEN_DIM):
    """Synthetic f32 parameters matching nn.Linear init.

    PyTorch stores Linear weight as (out, in); we store the transpose (in, out)
    so the kernel computes x @ W directly.
    """
    k1, k2, k3, k4 = jax.random.split(key, 4)
    d_hid = hidden_dim * 2
    s1 = 1.0 / jnp.sqrt(jnp.float32(input_dim))
    s2 = 1.0 / jnp.sqrt(jnp.float32(d_hid))
    w1 = jax.random.uniform(k1, (input_dim, d_hid), jnp.float32, -s1, s1)
    b1 = jax.random.uniform(k2, (d_hid,), jnp.float32, -s1, s1)
    w2 = jax.random.uniform(k3, (d_hid, hidden_dim), jnp.float32, -s2, s2)
    b2 = jax.random.uniform(k4, (hidden_dim,), jnp.float32, -s2, s2)
    return w1, b1, w2, b2


def prepare_params(w1, b1, w2, b2):
    """One-time conversion to kernel-ready layout/dtypes (bf16 weights, (1,N) f32 biases)."""
    return (w1.astype(jnp.bfloat16),
            b1.reshape(1, -1).astype(jnp.float32),
            w2.astype(jnp.bfloat16),
            b2.reshape(1, -1).astype(jnp.float32))


if __name__ == "__main__":
    key = jax.random.PRNGKey(0)
    kx, kp = jax.random.split(key)

    w1_f, b1_f, w2_f, b2_f = init_params(kp)
    params = prepare_params(w1_f, b1_f, w2_f, b2_f)

    for B in (8, 13):  # 13 exercises the masked partial-last-block path
        kx, sub = jax.random.split(kx)
        x = jax.random.normal(sub, (B, 1, INPUT_DIM), dtype=jnp.float32)

        out = jax.block_until_ready(audio_encoder_forward(x, params))
        assert out.shape == (B, HIDDEN_DIM)

        # Reference in plain JAX (eval mode: dropout = identity), using the same
        # bf16-quantized weights the kernel consumes; tolerance covers the bf16
        # MXU input rounding.
        x2d = jnp.squeeze(x, axis=1)
        w1r = params[0].astype(jnp.float32)
        w2r = params[2].astype(jnp.float32)
        ref = jnp.maximum(x2d @ w1r + params[1], 0.0) @ w2r + params[3]
        assert jnp.allclose(out, ref, atol=2e-2, rtol=2e-2), (
            "max abs err = %f" % float(jnp.max(jnp.abs(out - ref))))

    print("KERNEL_OK")
</pallas_src>

<mosaic_0001>
module attributes {stable_mosaic.version = 11 : i64} {
  func.func @_audio_encoder_kernel(%arg0: i32, %arg1: memref<8x74xf32, #tpu.memory_space<vmem>>, %arg2: memref<74x256xbf16, #tpu.memory_space<vmem>>, %arg3: memref<1x256xf32, #tpu.memory_space<vmem>>, %arg4: memref<256x128xbf16, #tpu.memory_space<vmem>>, %arg5: memref<1x128xf32, #tpu.memory_space<vmem>>, %arg6: memref<8x128xf32, #tpu.memory_space<vmem>>) attributes {dimension_semantics = [#tpu.dimension_semantics<parallel>], iteration_bounds = array<i64: 1>, scalar_prefetch = 0 : i64, scratch_operands = 0 : i64, tpu.core_type = #tpu.core_type<tc>, window_params = [{transform_indices = @transform_0, window_bounds = array<i64: 8, 74>}, {pipeline_mode = #tpu.pipeline_mode<synchronous>, transform_indices = @transform_1, window_bounds = array<i64: 74, 256>}, {pipeline_mode = #tpu.pipeline_mode<synchronous>, transform_indices = @transform_2, window_bounds = array<i64: 1, 256>}, {pipeline_mode = #tpu.pipeline_mode<synchronous>, transform_indices = @transform_3, window_bounds = array<i64: 256, 128>}, {pipeline_mode = #tpu.pipeline_mode<synchronous>, transform_indices = @transform_4, window_bounds = array<i64: 1, 128>}, {transform_indices = @transform_5, window_bounds = array<i64: 8, 128>}]} {
    %c0 = arith.constant 0 : index
    %c0_0 = arith.constant 0 : index
    %0 = vector.load %arg1[%c0, %c0_0] : memref<8x74xf32, #tpu.memory_space<vmem>>, vector<8x74xf32>
    %1 = arith.truncf %0 : vector<8x74xf32> to vector<8x74xbf16>
    %c0_1 = arith.constant 0 : index
    %c0_2 = arith.constant 0 : index
    %2 = vector.load %arg2[%c0_1, %c0_2] : memref<74x256xbf16, #tpu.memory_space<vmem>>, vector<74x256xbf16>
    %cst = arith.constant dense<0.000000e+00> : vector<8x256xf32>
    %3 = tpu.matmul %1, %2, %cst {dimension_numbers = #tpu.dot_dimension_numbers<[1], [0], [0], [1], [0, 0, 1, 1], [], []>} : vector<8x74xbf16>, vector<74x256xbf16>, vector<8x256xf32> -> vector<8x256xf32>
    %c0_3 = arith.constant 0 : index
    %c0_4 = arith.constant 0 : index
    %4 = vector.load %arg3[%c0_3, %c0_4] : memref<1x256xf32, #tpu.memory_space<vmem>>, vector<1x256xf32>
    %5 = vector.broadcast %4 : vector<1x256xf32> to vector<8x256xf32>
    %6 = arith.addf %3, %5 : vector<8x256xf32>
    %cst_5 = arith.constant 0.000000e+00 : f32
    %7 = vector.broadcast %cst_5 : f32 to vector<8x256xf32>
    %8 = arith.maximumf %6, %7 : vector<8x256xf32>
    %9 = arith.truncf %8 : vector<8x256xf32> to vector<8x256xbf16>
    %c0_6 = arith.constant 0 : index
    %c0_7 = arith.constant 0 : index
    %10 = vector.load %arg4[%c0_6, %c0_7] : memref<256x128xbf16, #tpu.memory_space<vmem>>, vector<256x128xbf16>
    %cst_8 = arith.constant dense<0.000000e+00> : vector<8x128xf32>
    %11 = tpu.matmul %9, %10, %cst_8 {dimension_numbers = #tpu.dot_dimension_numbers<[1], [0], [0], [1], [0, 0, 1, 1], [], []>} : vector<8x256xbf16>, vector<256x128xbf16>, vector<8x128xf32> -> vector<8x128xf32>
    %c0_9 = arith.constant 0 : index
    %c0_10 = arith.constant 0 : index
    %12 = vector.load %arg5[%c0_9, %c0_10] : memref<1x128xf32, #tpu.memory_space<vmem>>, vector<1x128xf32>
    %13 = vector.broadcast %12 : vector<1x128xf32> to vector<8x128xf32>
    %14 = arith.addf %11, %13 : vector<8x128xf32>
    %c0_11 = arith.constant 0 : index
    %c0_12 = arith.constant 0 : index
    %15 = vector.load %arg6[%c0_11, %c0_12] : memref<8x128xf32, #tpu.memory_space<vmem>>, vector<8x128xf32>
    tpu.vector_store %arg6[%c0_11, %c0_12], %14 {strides = array<i32>} : memref<8x128xf32, #tpu.memory_space<vmem>>, vector<8x128xf32>,
    return
  }
  func.func @transform_0(%arg0: i32) -> (i32, i32) {
    %c0_i32 = arith.constant 0 : i32
    %c0_i32_0 = arith.constant 0 : i32
    return %arg0, %c0_i32 : i32, i32
  }
  func.func @transform_1(%arg0: i32) -> (i32, i32) {
    %c0_i32 = arith.constant 0 : i32
    %c0_i32_0 = arith.constant 0 : i32
    %c0_i32_1 = arith.constant 0 : i32
    return %c0_i32, %c0_i32_0 : i32, i32
  }
  func.func @transform_2(%arg0: i32) -> (i32, i32) {
    %c0_i32 = arith.constant 0 : i32
    %c0_i32_0 = arith.constant 0 : i32
    %c0_i32_1 = arith.constant 0 : i32
    return %c0_i32, %c0_i32_0 : i32, i32
  }
  func.func @transform_3(%arg0: i32) -> (i32, i32) {
    %c0_i32 = arith.constant 0 : i32
    %c0_i32_0 = arith.constant 0 : i32
    %c0_i32_1 = arith.constant 0 : i32
    return %c0_i32, %c0_i32_0 : i32, i32
  }
  func.func @transform_4(%arg0: i32) -> (i32, i32) {
    %c0_i32 = arith.constant 0 : i32
    %c0_i32_0 = arith.constant 0 : i32
    %c0_i32_1 = arith.constant 0 : i32
    return %c0_i32, %c0_i32_0 : i32, i32
  }
  func.func @transform_5(%arg0: i32) -> (i32, i32) {
    %c0_i32 = arith.constant 0 : i32
    %c0_i32_0 = arith.constant 0 : i32
    return %arg0, %c0_i32 : i32, i32
  }
}

</mosaic_0001>

<llo_original>
// kernel: tpu_custom_call.1
$region0: #{tpu_custom_call.1}
  #allocation0 [shape = 'u32[]', space=smem, size = 0x4, offset = 0x4, fixed_abs, tag = 'smem constant byte address 0x4 - core index']
  #allocation1 [shape = 'u32[144,128]{1,0:T(1,128)}', space=vmem, size = 0x12000, scoped, tag = 'internal scratch']
  %s0 = inlined_call_operand.hbm [shape: f32[8,74], index: 0, kind: input, shape index: {}]
  %s1 = inlined_call_operand.hbm [shape: bf16[74,256], index: 1, kind: input, shape index: {}]
  %s2 = inlined_call_operand.vmem [shape: f32[1,256], index: 2, kind: input, shape index: {}]
  %s3 = inlined_call_operand.hbm [shape: bf16[256,128], index: 3, kind: input, shape index: {}]
  %s4 = inlined_call_operand.vmem [shape: f32[1,128], index: 4, kind: input, shape index: {}]
  %s5 = inlined_call_operand.hbm [shape: f32[8,128], index: 5, kind: output, shape index: {}]
  %s6 = sld [smem:[#allocation0]]
  $region42: #{tpu_custom_call.1} parent=0
    _
  %s8 = ssub.s32 1, %s6
  %s9 = scalar_select 0, %s8, %s6
  $region1: #{tpu_custom_call.1} parent=0
    #allocation2 [shape = 'u8[4096]{0}', space=vmem, size = 0x1000, scoped, tag = 'input window, operand 0, single buffered']
    #allocation3 [shape = 's32[1]{0}', space=sflag, size = 0x4, scoped, tag = 'scoped memory for tpu_custom_call.1']
    #allocation4 [shape = 's32[1]{0}', space=sflag, size = 0x4, scoped, tag = 'scoped memory for tpu_custom_call.1']
    #allocation5 [shape = 'u8[40960]{0}', space=vmem, size = 0xa000, scoped, tag = 'input window, operand 1, single buffered']
    #allocation6 [shape = 's32[1]{0}', space=sflag, size = 0x4, scoped, tag = 'scoped memory for tpu_custom_call.1']
    #allocation7 [shape = 'u8[65536]{0}', space=vmem, size = 0x10000, scoped, tag = 'input window, operand 3, single buffered']
    #allocation8 [shape = 'u8[4096]{0}', space=vmem, size = 0x1000, scoped, tag = 'output window, operand 0, single buffered']
    %10 = vsyncpa [#allocation3], 0
    %11 = vsyncpa [#allocation6], 0
    %12 = vsyncpa [#allocation4], 0
    // Predicated region
    $region2: #{tpu_custom_call.1} parent=1 // pred_check
      _
    $region3: #{tpu_custom_call.1} parent=1 // pred_check_branch
      %14 = sbr.rel (0) target = $region5
    $region4: #{tpu_custom_call.1} parent=1 // pred_region
      %s16 = ssub.s32 128, 128
      %17 = vsyncadd [#allocation3], %s16
      %s19 = sshll.u32 [#allocation2], 4
      %s20 = int_to_ptr.vmem [resolvable:$true] %s19
      %22 = dma.hbm_to_vmem [thread:$0]  %s0, 128, %s20, [#allocation3]
    $region5: #{tpu_custom_call.1} parent=1 // pred_fallthru
      _
    // Predicated region
    $region6: #{tpu_custom_call.1} parent=1 // pred_check
      _
    $region7: #{tpu_custom_call.1} parent=1 // pred_check_branch
      %24 = sbr.rel (0) target = $region9
    $region8: #{tpu_custom_call.1} parent=1 // pred_region
      %s26 = ssub.s32 1280, 1280
      %27 = vsyncadd [#allocation6], %s26
      %s28 = sshll.u32 [#allocation5], 4
      %s29 = int_to_ptr.vmem [resolvable:$true] %s28
      %34 = dma.hbm_to_vmem [thread:$0]  %s1, 1280, %s29, [#allocation6], 128, 128, 8
    $region9: #{tpu_custom_call.1} parent=1 // pred_fallthru
      _
    // Predicated region
    $region10: #{tpu_custom_call.1} parent=1 // pred_check
      _
    $region11: #{tpu_custom_call.1} parent=1 // pred_check_branch
      %36 = sbr.rel (0) target = $region13
    $region12: #{tpu_custom_call.1} parent=1 // pred_region
      _
    $region13: #{tpu_custom_call.1} parent=1 // pred_fallthru
      _
    // Predicated region
    $region14: #{tpu_custom_call.1} parent=1 // pred_check
      _
    $region15: #{tpu_custom_call.1} parent=1 // pred_check_branch
      %38 = sbr.rel (0) target = $region17
    $region16: #{tpu_custom_call.1} parent=1 // pred_region
      %s40 = ssub.s32 2048, 2048
      %41 = vsyncadd [#allocation6], %s40
      %s42 = sshll.u32 [#allocation7], 4
      %s43 = int_to_ptr.vmem [resolvable:$true] %s42
      %48 = dma.hbm_to_vmem [thread:$0]  %s3, 2048, %s43, [#allocation6], 64, 64, 4
    $region17: #{tpu_custom_call.1} parent=1 // pred_fallthru
      _
    // Predicated region
    $region18: #{tpu_custom_call.1} parent=1 // pred_check
      _
    $region19: #{tpu_custom_call.1} parent=1 // pred_check_branch
      %50 = sbr.rel (0) target = $region21
    $region20: #{tpu_custom_call.1} parent=1 // pred_region
      _
    $region21: #{tpu_custom_call.1} parent=1 // pred_fallthru
      _
    // Predicated region
    $region22: #{tpu_custom_call.1} parent=1 // pred_check
      _
    $region23: #{tpu_custom_call.1} parent=1 // pred_check_branch
      %52 = sbr.rel (0) target = $region25
    $region24: #{tpu_custom_call.1} parent=1 // pred_region
      %53 = dma.done [#allocation3], 128
    $region25: #{tpu_custom_call.1} parent=1 // pred_fallthru
      _
    // Predicated region
    $region26: #{tpu_custom_call.1} parent=1 // pred_check
      _
    $region27: #{tpu_custom_call.1} parent=1 // pred_check_branch
      %55 = sbr.rel (0) target = $region29
    $region28: #{tpu_custom_call.1} parent=1 // pred_region
      %56 = dma.done [#allocation6], 1280
    $region29: #{tpu_custom_call.1} parent=1 // pred_fallthru
      _
    // Predicated region
    $region30: #{tpu_custom_call.1} parent=1 // pred_check
      _
    $region31: #{tpu_custom_call.1} parent=1 // pred_check_branch
      %58 = sbr.rel (0) target = $region33
    $region32: #{tpu_custom_call.1} parent=1 // pred_region
      %59 = dma.done [#allocation6], 2048
    $region33: #{tpu_custom_call.1} parent=1 // pred_fallthru
      _
    %v61 = vld [vmem:[#allocation2] sm:$0xff]
    %v62 = vpack.c.bf16 %v61, %v61
    %v63 = vld [vmem:[#allocation5] sm:$0xff]
    %v64 = vld [vmem:[#allocation5 + $0x8] sm:$0xff]
    %v65 = vld [vmem:[#allocation5 + $0x10] sm:$0xff]
    %v66 = vld [vmem:[#allocation5 + $0x18] sm:$0xff]
    %v67 = vld [vmem:[#allocation5 + $0x20] sm:$0xff]
    %v68 = vld [vmem:[#allocation5 + $0x28] sm:$0xff]
    %v69 = vld [vmem:[#allocation5 + $0x30] sm:$0xff]
    %v70 = vld [vmem:[#allocation5 + $0x38] sm:$0xff]
    %v71 = vld [vmem:[#allocation5 + $0x40] sm:$0xff]
    %v72 = vld [vmem:[#allocation5 + $0x48] sm:$0x11]
    %v73 = vld [vmem:[%s2] sm:$0x3]
    %v75 = vlaneseq
    %v76 = vshrl.u32 %v75, 7
    %v77 = vsub.s32 0, %v76
    %v78 = vrot.slane %v73, %v77
    %v79 = vlaneseq
    %v80 = vshrl.u32 %v79, 7
    %v81 = vsub.s32 1, %v80
    %v82 = vrot.slane %v73, %v81
    %v95 = vunpack.c.l.b16 %v63
    %v96 = vunpack.c.h.b16 %v63
    %v97 = vunpack.c.l.b16 %v64
    %v98 = vunpack.c.h.b16 %v64
    %v99 = vunpack.c.l.b16 %v65
    %v100 = vunpack.c.h.b16 %v65
    %v101 = vunpack.c.l.b16 %v66
    %v102 = vunpack.c.h.b16 %v66
    %v103 = vunpack.c.l.b16 %v67
    %v104 = vunpack.c.h.b16 %v67
    %v105 = vunpack.c.l.b16 %v68
    %v106 = vunpack.c.h.b16 %v68
    %v107 = vunpack.c.l.b16 %v69
    %v108 = vunpack.c.h.b16 %v69
    %v109 = vunpack.c.l.b16 %v70
    %v110 = vunpack.c.h.b16 %v70
    %v111 = vunpack.c.l.b16 %v71
    %v112 = vunpack.c.h.b16 %v71
    %v113 = vunpack.c.l.b16 %v72
    %v114 = vunpack.c.h.b16 %v72
    %v115 = vpack.c.b16 %v97, %v95
    %v116 = vpack.c.b16 %v98, %v96
    %v117 = vpack.c.b16 %v101, %v99
    %v118 = vpack.c.b16 %v102, %v100
    %v119 = vpack.c.b16 %v105, %v103
    %v120 = vpack.c.b16 %v106, %v104
    %v121 = vpack.c.b16 %v109, %v107
    %v122 = vpack.c.b16 %v110, %v108
    %v123 = vpack.c.b16 %v113, %v111
    %v124 = vpack.c.b16 %v114, %v112
    %vm133 = vcmask 605184
    %v135 = vsel %vm133, %v62, 0
    %vm137 = vcmask 1044480
    %v139 = vsel %vm137, %v123, 0
    %v142 = vsel %vm137, %v124, 0
    %144 = vmatprep.subr.bf16.mxu0 0
    %145 = vmatpush1.bf16.msra.mxu0 0
    %146 = vmatprep.subr.bf16.mxu0 0
    %147 = vmatpush1.bf16.msra.mxu0 0
    %148 = vmatprep.subr.bf16.mxu0 0
    %149 = vmatpush1.bf16.msra.mxu0 0
    %150 = vmatprep.subr.bf16.mxu0 %v142
    %151 = vmatpush1.bf16.msra.mxu0 %v139
    %152 = vmatprep.subr.bf16.mxu0 %v122
    %153 = vmatpush1.bf16.msra.mxu0 %v121
    %154 = vmatprep.subr.bf16.mxu0 %v120
    %155 = vmatpush1.bf16.msra.mxu0 %v119
    %156 = vmatprep.subr.bf16.mxu0 %v118
    %157 = vmatpush1.bf16.msra.mxu0 %v117
    %158 = vmatprep.subr.bf16.mxu0 %v116
    %159 = vmatpush1.bf16.msra.mxu0 %v115
    %160 = vmatprep.subr.bf16.mxu0 0
    %161 = vmatpush2.bf16.msra.mxu0 0
    %162 = vmatprep.subr.bf16.mxu0 0
    %163 = vmatpush2.bf16.msra.mxu0 0
    %164 = vmatprep.subr.bf16.mxu0 0
    %165 = vmatpush2.bf16.msra.mxu0 0
    %166 = vmatprep.subr.bf16.mxu0 0
    %167 = vmatpush2.bf16.msra.mxu0 0
    %168 = vmatprep.subr.bf16.mxu0 0
    %169 = vmatpush2.bf16.msra.mxu0 0
    %170 = vmatprep.subr.bf16.mxu0 0
    %171 = vmatpush2.bf16.msra.mxu0 0
    %172 = vmatprep.subr.bf16.mxu0 0
    %173 = vmatpush2.bf16.msra.mxu0 0
    %174 = vmatprep.subr.bf16.mxu0 0
    %175 = vmatpush2.bf16.msra.mxu0 0
    %176 = vmatprep.mubr.bf16.mxu0 0
    %177 = vmatmul.mubr.bf16.gmra.mxu0 %v135
    %v178 = vpop.f32.mrf.mxu0
    %v179 = vadd.f32 %v78, %v178
    %v180 = vpop.f32.mrf.mxu0
    %v181 = vadd.f32 %v82, %v180
    %v182 = vpop.f32.mrf.mxu0
    %v183 = vpop.f32.mrf.mxu0
    %184 = vdwg.mxu0
    %v185 = vmax.f32 %v179, 0.0
    %v186 = vmax.f32 %v181, 0.0
    %v187 = vpack.c.bf16 %v185, %v185
    %v188 = vpack.c.bf16 %v186, %v186
    %v189 = vld [vmem:[#allocation7] sm:$0xf]
    %v190 = vld [vmem:[#allocation7 + $0x4] sm:$0xf]
    %v191 = vld [vmem:[#allocation7 + $0x8] sm:$0xf]
    %v192 = vld [vmem:[#allocation7 + $0xc] sm:$0xf]
    %v193 = vld [vmem:[#allocation7 + $0x10] sm:$0xf]
    %v194 = vld [vmem:[#allocation7 + $0x14] sm:$0xf]
    %v195 = vld [vmem:[#allocation7 + $0x18] sm:$0xf]
    %v196 = vld [vmem:[#allocation7 + $0x1c] sm:$0xf]
    %v197 = vld [vmem:[#allocation7 + $0x20] sm:$0xf]
    %v198 = vld [vmem:[#allocation7 + $0x24] sm:$0xf]
    %v199 = vld [vmem:[#allocation7 + $0x28] sm:$0xf]
    %v200 = vld [vmem:[#allocation7 + $0x2c] sm:$0xf]
    %v201 = vld [vmem:[#allocation7 + $0x30] sm:$0xf]
    %v202 = vld [vmem:[#allocation7 + $0x34] sm:$0xf]
    %v203 = vld [vmem:[#allocation7 + $0x38] sm:$0xf]
    %v204 = vld [vmem:[#allocation7 + $0x3c] sm:$0xf]
    %v205 = vld [vmem:[#allocation7 + $0x40] sm:$0xf]
    %v206 = vld [vmem:[#allocation7 + $0x44] sm:$0xf]
    %v207 = vld [vmem:[#allocation7 + $0x48] sm:$0xf]
    %v208 = vld [vmem:[#allocation7 + $0x4c] sm:$0xf]
    %v209 = vld [vmem:[#allocation7 + $0x50] sm:$0xf]
    %v210 = vld [vmem:[#allocation7 + $0x54] sm:$0xf]
    %v211 = vld [vmem:[#allocation7 + $0x58] sm:$0xf]
    %v212 = vld [vmem:[#allocation7 + $0x5c] sm:$0xf]
    %v213 = vld [vmem:[#allocation7 + $0x60] sm:$0xf]
    %v214 = vld [vmem:[#allocation7 + $0x64] sm:$0xf]
    %v215 = vld [vmem:[#allocation7 + $0x68] sm:$0xf]
    %v216 = vld [vmem:[#allocation7 + $0x6c] sm:$0xf]
    %v217 = vld [vmem:[#allocation7 + $0x70] sm:$0xf]
    %v218 = vld [vmem:[#allocation7 + $0x74] sm:$0xf]
    %v219 = vld [vmem:[#allocation7 + $0x78] sm:$0xf]
    %v220 = vld [vmem:[#allocation7 + $0x7c] sm:$0xf]
    %v221 = vld [vmem:[%s4] sm:$0x1]
    %v223 = vlaneseq
    %v224 = vshrl.u32 %v223, 7
    %v225 = vsub.s32 0, %v224
    %v226 = vrot.slane %v221, %v225
    %v260 = vunpack.c.l.b16 %v189
    %v261 = vunpack.c.l.b16 %v190
    %v262 = vunpack.c.l.b16 %v191
    %v263 = vunpack.c.l.b16 %v192
    %v264 = vunpack.c.l.b16 %v193
    %v265 = vunpack.c.l.b16 %v194
    %v266 = vunpack.c.l.b16 %v195
    %v267 = vunpack.c.l.b16 %v196
    %v268 = vunpack.c.l.b16 %v197
    %v269 = vunpack.c.l.b16 %v198
    %v270 = vunpack.c.l.b16 %v199
    %v271 = vunpack.c.l.b16 %v200
    %v272 = vunpack.c.l.b16 %v201
    %v273 = vunpack.c.l.b16 %v202
    %v274 = vunpack.c.l.b16 %v203
    %v275 = vunpack.c.l.b16 %v204
    %v276 = vunpack.c.l.b16 %v205
    %v277 = vunpack.c.l.b16 %v206
    %v278 = vunpack.c.l.b16 %v207
    %v279 = vunpack.c.l.b16 %v208
    %v280 = vunpack.c.l.b16 %v209
    %v281 = vunpack.c.l.b16 %v210
    %v282 = vunpack.c.l.b16 %v211
    %v283 = vunpack.c.l.b16 %v212
    %v284 = vunpack.c.l.b16 %v213
    %v285 = vunpack.c.l.b16 %v214
    %v286 = vunpack.c.l.b16 %v215
    %v287 = vunpack.c.l.b16 %v216
    %v288 = vunpack.c.l.b16 %v217
    %v289 = vunpack.c.l.b16 %v218
    %v290 = vunpack.c.l.b16 %v219
    %v291 = vunpack.c.l.b16 %v220
    %v292 = vpack.c.b16 %v261, %v260
    %v293 = vpack.c.b16 %v263, %v262
    %v294 = vpack.c.b16 %v265, %v264
    %v295 = vpack.c.b16 %v267, %v266
    %v296 = vpack.c.b16 %v269, %v268
    %v297 = vpack.c.b16 %v271, %v270
    %v298 = vpack.c.b16 %v273, %v272
    %v299 = vpack.c.b16 %v275, %v274
    %v300 = vpack.c.b16 %v277, %v276
    %v301 = vpack.c.b16 %v279, %v278
    %v302 = vpack.c.b16 %v281, %v280
    %v303 = vpack.c.b16 %v283, %v282
    %v304 = vpack.c.b16 %v285, %v284
    %v305 = vpack.c.b16 %v287, %v286
    %v306 = vpack.c.b16 %v289, %v288
    %v307 = vpack.c.b16 %v291, %v290
    %324 = vmatprep.subr.bf16.mxu0 0
    %325 = vmatpush1.bf16.msra.mxu0 %v299
    %326 = vmatprep.subr.bf16.mxu0 0
    %327 = vmatpush1.bf16.msra.mxu0 %v298
    %328 = vmatprep.subr.bf16.mxu0 0
    %329 = vmatpush1.bf16.msra.mxu0 %v297
    %330 = vmatprep.subr.bf16.mxu0 0
    %331 = vmatpush1.bf16.msra.mxu0 %v296
    %332 = vmatprep.subr.bf16.mxu0 0
    %333 = vmatpush1.bf16.msra.mxu0 %v295
    %334 = vmatprep.subr.bf16.mxu0 0
    %335 = vmatpush1.bf16.msra.mxu0 %v294
    %336 = vmatprep.subr.bf16.mxu0 0
    %337 = vmatpush1.bf16.msra.mxu0 %v293
    %338 = vmatprep.subr.bf16.mxu0 0
    %339 = vmatpush1.bf16.msra.mxu0 %v292
    %340 = vmatprep.subr.bf16.mxu0 0
    %341 = vmatpush2.bf16.msra.mxu0 %v307
    %342 = vmatprep.subr.bf16.mxu0 0
    %343 = vmatpush2.bf16.msra.mxu0 %v306
    %344 = vmatprep.subr.bf16.mxu0 0
    %345 = vmatpush2.bf16.msra.mxu0 %v305
    %346 = vmatprep.subr.bf16.mxu0 0
    %347 = vmatpush2.bf16.msra.mxu0 %v304
    %348 = vmatprep.subr.bf16.mxu0 0
    %349 = vmatpush2.bf16.msra.mxu0 %v303
    %350 = vmatprep.subr.bf16.mxu0 0
    %351 = vmatpush2.bf16.msra.mxu0 %v302
    %352 = vmatprep.subr.bf16.mxu0 0
    %353 = vmatpush2.bf16.msra.mxu0 %v301
    %354 = vmatprep.subr.bf16.mxu0 0
    %355 = vmatpush2.bf16.msra.mxu0 %v300
    %356 = vmatprep.mubr.bf16.mxu0 %v188
    %357 = vmatmul.mubr.bf16.gmra.mxu0 %v187
    %v358 = vpop.f32.mrf.mxu0
    %v359 = vadd.f32 %v226, %v358
    %v360 = vpop.f32.mrf.mxu0
    %v361 = vpop.f32.mrf.mxu0
    %v362 = vpop.f32.mrf.mxu0
    %363 = vdwg.mxu0
    %364 = vst [vmem:[#allocation8] sm:$0xff] %v359
    // Predicated region
    $region34: #{tpu_custom_call.1} parent=1 // pred_check
      _
    $region35: #{tpu_custom_call.1} parent=1 // pred_check_branch
      %366 = sbr.rel (0) target = $region37
    $region36: #{tpu_custom_call.1} parent=1 // pred_region
      %s368 = ssub.s32 128, 128
      %369 = vsyncadd [#allocation4], %s368
      %s371 = sshll.u32 [#allocation8], 4
      %s372 = int_to_ptr.vmem [resolvable:$true] %s371
      %374 = dma.vmem_to_hbm [thread:$0]  %s372, 128, %s5, [#allocation4]
    $region37: #{tpu_custom_call.1} parent=1 // pred_fallthru
      _
    // Predicated region
    $region38: #{tpu_custom_call.1} parent=1 // pred_check
      _
    $region39: #{tpu_custom_call.1} parent=1 // pred_check_branch
      %376 = sbr.rel (0) target = $region41
    $region40: #{tpu_custom_call.1} parent=1 // pred_region
      %377 = dma.done [#allocation4], 128
    $region41: #{tpu_custom_call.1} parent=1 // pred_fallthru
      _
    %378 = vsyncpa [#allocation3], 1
    %379 = vsyncpa [#allocation6], 1
    %380 = vsyncpa [#allocation4], 1

</llo_original>
